<compile_context>
chip_gen: v6e
topology: v6e:2x2x1
jax: 0.10.0
libtpu: 0.0.40
codegen_flags: <defaults>
</compile_context>

<pallas_src>
import jax
import jax.numpy as jnp
from jax.experimental import pallas as pl
from jax.experimental.pallas import tpu as pltpu

# ---- shapes consistent with Conv2d(4, 8, kernel_size=3, padding=1) ----
N, C_IN, H, W = 2, 4, 16, 16
C_OUT, KH, KW = 8, 3, 3
PAD = 1
WIDTH = C_IN * KH * KW      # 36
HW = H * W                  # 256


def sn_conv_kernel(u_ref, w_ref, b_ref, p_ref, o_ref):
    """Fused: power iteration -> sigma -> W/sigma -> im2col matmul + bias."""
    w = w_ref[...].astype(jnp.float32)                       # (C_OUT, WIDTH)
    u = u_ref[...].astype(jnp.float32)                       # (C_OUT, 1)

    # ---- one power-iteration step (eps=1e-12 is numerically negligible here) ----
    v = jnp.sum(w * u, axis=0, keepdims=True)                # (1, WIDTH)  = W^T u
    v = v * jax.lax.rsqrt(jnp.sum(v * v, axis=1, keepdims=True))
    u1 = jnp.sum(w * v, axis=1, keepdims=True)               # (C_OUT, 1)  = W v
    u1 = u1 * jax.lax.rsqrt(jnp.sum(u1 * u1, axis=0, keepdims=True))

    # ---- sigma = u1^T W v ; fold 1/sigma into the weight once ----
    t = u1 * w * v                                            # (C_OUT, WIDTH)
    sigma = jnp.sum(jnp.sum(t, axis=1, keepdims=True), axis=0, keepdims=True)  # (1,1)
    wn = w * pl.reciprocal(sigma)                             # normalized weight

    # ---- conv as per-batch matmul, lane-dense (C_OUT, HW) output ----
    b = b_ref[...]                                            # (C_OUT, 1)
    for n in range(N):                                        # N = 2, static unroll
        acc = jnp.dot(wn, p_ref[n], preferred_element_type=jnp.float32)  # (C_OUT, HW)
        o_ref[n] = (acc + b).astype(o_ref.dtype)


@jax.jit
def spectral_norm_conv_forward(x, w, b, u):
    w_flat = w.reshape(C_OUT, WIDTH)                          # matches w.view(height, -1)

    # im2col in a layout requiring no XLA transposes:
    # feature index f = ci*KH*KW + i*KW + j (matches flattened OIHW weight),
    # column index = h*W + w (row-major spatial) -> final output reshapes to NCHW.
    xp = jnp.pad(x, ((0, 0), (0, 0), (PAD, PAD), (PAD, PAD)))
    taps = [xp[:, :, i:i + H, j:j + W] for i in range(KH) for j in range(KW)]
    patches = jnp.stack(taps, axis=2)                         # (N, C_IN, KH*KW, H, W)
    patches = patches.reshape(N, WIDTH, HW)                   # contiguous reshape only

    out = pl.pallas_call(
        sn_conv_kernel,
        out_shape=jax.ShapeDtypeStruct((N, C_OUT, HW), jnp.float32),
        grid=(1,),
        in_specs=[
            pl.BlockSpec((C_OUT, 1), lambda i: (0, 0)),               # u
            pl.BlockSpec((C_OUT, WIDTH), lambda i: (0, 0)),           # w_flat
            pl.BlockSpec((C_OUT, 1), lambda i: (0, 0)),               # bias
            pl.BlockSpec((N, WIDTH, HW), lambda i: (0, 0, 0)),        # patches
        ],
        out_specs=pl.BlockSpec((N, C_OUT, HW), lambda i: (0, 0, 0)),
        compiler_params=pltpu.CompilerParams(
            dimension_semantics=("arbitrary",)),
    )(u, w_flat, b.reshape(C_OUT, 1), patches)

    return out.reshape(N, C_OUT, H, W)                        # pure reshape -> NCHW


def reference(x, w, b, u):
    """Pure-JAX reference of the exact PyTorch forward semantics."""
    w_flat = w.reshape(C_OUT, -1)
    v = w_flat.T @ u
    v = v / (jnp.linalg.norm(v) + 1e-12)
    u1 = w_flat @ v
    u1 = u1 / (jnp.linalg.norm(u1) + 1e-12)
    sigma = (u1.T @ w_flat @ v)[0, 0]
    wn = w / sigma
    y = jax.lax.conv_general_dilated(
        x, wn, window_strides=(1, 1), padding=((PAD, PAD), (PAD, PAD)),
        dimension_numbers=("NCHW", "OIHW", "NCHW"))
    return y + b.reshape(1, C_OUT, 1, 1)


if __name__ == "__main__":
    key = jax.random.PRNGKey(0)
    kx, kw, kb, ku = jax.random.split(key, 4)
    x = jax.random.normal(kx, (N, C_IN, H, W), jnp.float32)
    w = jax.random.normal(kw, (C_OUT, C_IN, KH, KW), jnp.float32) * 0.1
    b = jax.random.normal(kb, (C_OUT,), jnp.float32) * 0.1
    u = jax.random.normal(ku, (C_OUT, 1), jnp.float32)  # module buffer `u`
    # NOTE: the module also registers buffer v (1, WIDTH); with niter>=1 it is
    # overwritten before use and does not affect the forward pass.

    y = spectral_norm_conv_forward(x, w, b, u)
    y = jax.block_until_ready(y)

    y_ref = reference(x, w, b, u)
    assert y.shape == (N, C_OUT, H, W), y.shape
    assert bool(jnp.allclose(y, y_ref, atol=1e-4, rtol=1e-4)), "mismatch vs reference"
    print("KERNEL_OK")
</pallas_src>

<mosaic_0001>
module attributes {stable_mosaic.version = 11 : i64} {
  func.func @sn_conv_kernel(%arg0: i32, %arg1: memref<8x1xf32, #tpu.memory_space<vmem>>, %arg2: memref<8x36xf32, #tpu.memory_space<vmem>>, %arg3: memref<8x1xf32, #tpu.memory_space<vmem>>, %arg4: memref<2x36x256xf32, #tpu.memory_space<vmem>>, %arg5: memref<2x8x256xf32, #tpu.memory_space<vmem>>) attributes {dimension_semantics = [#tpu.dimension_semantics<arbitrary>], iteration_bounds = array<i64: 1>, scalar_prefetch = 0 : i64, scratch_operands = 0 : i64, tpu.core_type = #tpu.core_type<tc>, window_params = [{pipeline_mode = #tpu.pipeline_mode<synchronous>, transform_indices = @transform_0, window_bounds = array<i64: 8, 1>}, {pipeline_mode = #tpu.pipeline_mode<synchronous>, transform_indices = @transform_1, window_bounds = array<i64: 8, 36>}, {pipeline_mode = #tpu.pipeline_mode<synchronous>, transform_indices = @transform_2, window_bounds = array<i64: 8, 1>}, {pipeline_mode = #tpu.pipeline_mode<synchronous>, transform_indices = @transform_3, window_bounds = array<i64: 2, 36, 256>}, {pipeline_mode = #tpu.pipeline_mode<synchronous>, transform_indices = @transform_4, window_bounds = array<i64: 2, 8, 256>}]} {
    %c0 = arith.constant 0 : index
    %c0_0 = arith.constant 0 : index
    %0 = vector.load %arg2[%c0, %c0_0] : memref<8x36xf32, #tpu.memory_space<vmem>>, vector<8x36xf32>
    %c0_1 = arith.constant 0 : index
    %c0_2 = arith.constant 0 : index
    %1 = vector.load %arg1[%c0_1, %c0_2] : memref<8x1xf32, #tpu.memory_space<vmem>>, vector<8x1xf32>
    %2 = vector.broadcast %1 : vector<8x1xf32> to vector<8x36xf32>
    %3 = arith.mulf %0, %2 : vector<8x36xf32>
    %cst = arith.constant dense<0.000000e+00> : vector<36xf32>
    %4 = vector.multi_reduction <add>, %3, %cst [0] : vector<8x36xf32> to vector<36xf32>
    %5 = vector.shape_cast %4 : vector<36xf32> to vector<1x36xf32>
    %6 = arith.mulf %5, %5 : vector<1x36xf32>
    %cst_3 = arith.constant dense<0.000000e+00> : vector<1xf32>
    %7 = vector.multi_reduction <add>, %6, %cst_3 [1] : vector<1x36xf32> to vector<1xf32>
    %8 = vector.shape_cast %7 : vector<1xf32> to vector<1x1xf32>
    %9 = math.rsqrt %8 : vector<1x1xf32>
    %10 = vector.broadcast %9 : vector<1x1xf32> to vector<1x36xf32>
    %11 = arith.mulf %5, %10 : vector<1x36xf32>
    %12 = vector.broadcast %11 : vector<1x36xf32> to vector<8x36xf32>
    %13 = arith.mulf %0, %12 : vector<8x36xf32>
    %cst_4 = arith.constant dense<0.000000e+00> : vector<8xf32>
    %14 = vector.multi_reduction <add>, %13, %cst_4 [1] : vector<8x36xf32> to vector<8xf32>
    %15 = vector.shape_cast %14 : vector<8xf32> to vector<8x1xf32>
    %16 = arith.mulf %15, %15 : vector<8x1xf32>
    %cst_5 = arith.constant dense<0.000000e+00> : vector<1xf32>
    %17 = vector.multi_reduction <add>, %16, %cst_5 [0] : vector<8x1xf32> to vector<1xf32>
    %18 = vector.shape_cast %17 : vector<1xf32> to vector<1x1xf32>
    %19 = math.rsqrt %18 : vector<1x1xf32>
    %20 = vector.broadcast %19 : vector<1x1xf32> to vector<8x1xf32>
    %21 = arith.mulf %15, %20 : vector<8x1xf32>
    %22 = vector.broadcast %21 : vector<8x1xf32> to vector<8x36xf32>
    %23 = arith.mulf %22, %0 : vector<8x36xf32>
    %24 = vector.broadcast %11 : vector<1x36xf32> to vector<8x36xf32>
    %25 = arith.mulf %23, %24 : vector<8x36xf32>
    %cst_6 = arith.constant dense<0.000000e+00> : vector<8xf32>
    %26 = vector.multi_reduction <add>, %25, %cst_6 [1] : vector<8x36xf32> to vector<8xf32>
    %27 = vector.shape_cast %26 : vector<8xf32> to vector<8x1xf32>
    %cst_7 = arith.constant dense<0.000000e+00> : vector<1xf32>
    %28 = vector.multi_reduction <add>, %27, %cst_7 [0] : vector<8x1xf32> to vector<1xf32>
    %29 = vector.shape_cast %28 : vector<1xf32> to vector<1x1xf32>
    %30 = tpu.reciprocal %29 : vector<1x1xf32> -> vector<1x1xf32>
    %31 = vector.broadcast %30 : vector<1x1xf32> to vector<8x36xf32>
    %32 = arith.mulf %0, %31 : vector<8x36xf32>
    %c0_8 = arith.constant 0 : index
    %c0_9 = arith.constant 0 : index
    %33 = vector.load %arg3[%c0_8, %c0_9] : memref<8x1xf32, #tpu.memory_space<vmem>>, vector<8x1xf32>
    %c0_10 = arith.constant 0 : index
    %c0_11 = arith.constant 0 : index
    %c0_12 = arith.constant 0 : index
    %34 = vector.load %arg4[%c0_10, %c0_11, %c0_12] : memref<2x36x256xf32, #tpu.memory_space<vmem>>, vector<1x36x256xf32>
    %35 = vector.shape_cast %34 : vector<1x36x256xf32> to vector<36x256xf32>
    %cst_13 = arith.constant dense<0.000000e+00> : vector<8x256xf32>
    %36 = tpu.matmul %32, %35, %cst_13 {dimension_numbers = #tpu.dot_dimension_numbers<[1], [0], [0], [1], [0, 0, 1, 1], [], []>} : vector<8x36xf32>, vector<36x256xf32>, vector<8x256xf32> -> vector<8x256xf32>
    %37 = vector.broadcast %33 : vector<8x1xf32> to vector<8x256xf32>
    %38 = arith.addf %36, %37 : vector<8x256xf32>
    %c0_14 = arith.constant 0 : index
    %c0_15 = arith.constant 0 : index
    %c0_16 = arith.constant 0 : index
    %39 = vector.load %arg5[%c0_14, %c0_15, %c0_16] : memref<2x8x256xf32, #tpu.memory_space<vmem>>, vector<1x8x256xf32>
    %40 = vector.shape_cast %39 : vector<1x8x256xf32> to vector<8x256xf32>
    %41 = vector.shape_cast %38 : vector<8x256xf32> to vector<1x8x256xf32>
    tpu.vector_store %arg5[%c0_14, %c0_15, %c0_16], %41 {strides = array<i32>} : memref<2x8x256xf32, #tpu.memory_space<vmem>>, vector<1x8x256xf32>,
    %c1 = arith.constant 1 : index
    %c0_17 = arith.constant 0 : index
    %c0_18 = arith.constant 0 : index
    %42 = vector.load %arg4[%c1, %c0_17, %c0_18] : memref<2x36x256xf32, #tpu.memory_space<vmem>>, vector<1x36x256xf32>
    %43 = vector.shape_cast %42 : vector<1x36x256xf32> to vector<36x256xf32>
    %cst_19 = arith.constant dense<0.000000e+00> : vector<8x256xf32>
    %44 = tpu.matmul %32, %43, %cst_19 {dimension_numbers = #tpu.dot_dimension_numbers<[1], [0], [0], [1], [0, 0, 1, 1], [], []>} : vector<8x36xf32>, vector<36x256xf32>, vector<8x256xf32> -> vector<8x256xf32>
    %45 = vector.broadcast %33 : vector<8x1xf32> to vector<8x256xf32>
    %46 = arith.addf %44, %45 : vector<8x256xf32>
    %c1_20 = arith.constant 1 : index
    %c0_21 = arith.constant 0 : index
    %c0_22 = arith.constant 0 : index
    %47 = vector.load %arg5[%c1_20, %c0_21, %c0_22] : memref<2x8x256xf32, #tpu.memory_space<vmem>>, vector<1x8x256xf32>
    %48 = vector.shape_cast %47 : vector<1x8x256xf32> to vector<8x256xf32>
    %49 = vector.shape_cast %46 : vector<8x256xf32> to vector<1x8x256xf32>
    tpu.vector_store %arg5[%c1_20, %c0_21, %c0_22], %49 {strides = array<i32>} : memref<2x8x256xf32, #tpu.memory_space<vmem>>, vector<1x8x256xf32>,
    return
  }
  func.func @transform_0(%arg0: i32) -> (i32, i32) {
    %c0_i32 = arith.constant 0 : i32
    %c0_i32_0 = arith.constant 0 : i32
    %c0_i32_1 = arith.constant 0 : i32
    return %c0_i32, %c0_i32_0 : i32, i32
  }
  func.func @transform_1(%arg0: i32) -> (i32, i32) {
    %c0_i32 = arith.constant 0 : i32
    %c0_i32_0 = arith.constant 0 : i32
    %c0_i32_1 = arith.constant 0 : i32
    return %c0_i32, %c0_i32_0 : i32, i32
  }
  func.func @transform_2(%arg0: i32) -> (i32, i32) {
    %c0_i32 = arith.constant 0 : i32
    %c0_i32_0 = arith.constant 0 : i32
    %c0_i32_1 = arith.constant 0 : i32
    return %c0_i32, %c0_i32_0 : i32, i32
  }
  func.func @transform_3(%arg0: i32) -> (i32, i32, i32) {
    %c0_i32 = arith.constant 0 : i32
    %c0_i32_0 = arith.constant 0 : i32
    %c0_i32_1 = arith.constant 0 : i32
    %c0_i32_2 = arith.constant 0 : i32
    return %c0_i32, %c0_i32_0, %c0_i32_1 : i32, i32, i32
  }
  func.func @transform_4(%arg0: i32) -> (i32, i32, i32) {
    %c0_i32 = arith.constant 0 : i32
    %c0_i32_0 = arith.constant 0 : i32
    %c0_i32_1 = arith.constant 0 : i32
    %c0_i32_2 = arith.constant 0 : i32
    return %c0_i32, %c0_i32_0, %c0_i32_1 : i32, i32, i32
  }
}

</mosaic_0001>

<llo_original>
// kernel: spectral_norm_conv_forward.1
$region0: #{spectral_norm_conv_forward.1}
  #allocation0 [shape = 'u32[]', space=smem, size = 0x4, offset = 0x4, fixed_abs, tag = 'smem constant byte address 0x4 - core index']
  #allocation1 [shape = 'u32[144,128]{1,0:T(1,128)}', space=vmem, size = 0x12000, scoped, tag = 'internal scratch']
  %s0 = inlined_call_operand.vmem [shape: f32[8,1], index: 0, kind: input, shape index: {}]
  %s1 = inlined_call_operand.vmem [shape: f32[8,36], index: 1, kind: input, shape index: {}]
  %s2 = inlined_call_operand.vmem [shape: f32[8,1], index: 2, kind: input, shape index: {}]
  %s3 = inlined_call_operand.vmem [shape: f32[2,36,256], index: 3, kind: input, shape index: {}]
  %s4 = inlined_call_operand.vmem [shape: f32[2,8,256], index: 4, kind: output, shape index: {}]
  %s5 = sld [smem:[#allocation0]]
  $region26: #{spectral_norm_conv_forward.1} parent=0
    _
  %s7 = ssub.s32 1, %s5
  %s8 = scalar_select 0, %s7, %s5
  // Predicated region
  $region2: #{spectral_norm_conv_forward.1} parent=0 // pred_check
    _
  $region3: #{spectral_norm_conv_forward.1} parent=0 // pred_check_branch
    %10 = sbr.rel (0) target = $region5
  $region4: #{spectral_norm_conv_forward.1} parent=0 // pred_region
    _
  $region5: #{spectral_norm_conv_forward.1} parent=0 // pred_fallthru
    _
  // Predicated region
  $region6: #{spectral_norm_conv_forward.1} parent=0 // pred_check
    _
  $region7: #{spectral_norm_conv_forward.1} parent=0 // pred_check_branch
    %12 = sbr.rel (0) target = $region9
  $region8: #{spectral_norm_conv_forward.1} parent=0 // pred_region
    _
  $region9: #{spectral_norm_conv_forward.1} parent=0 // pred_fallthru
    _
  // Predicated region
  $region10: #{spectral_norm_conv_forward.1} parent=0 // pred_check
    _
  $region11: #{spectral_norm_conv_forward.1} parent=0 // pred_check_branch
    %14 = sbr.rel (0) target = $region13
  $region12: #{spectral_norm_conv_forward.1} parent=0 // pred_region
    _
  $region13: #{spectral_norm_conv_forward.1} parent=0 // pred_fallthru
    _
  // Predicated region
  $region14: #{spectral_norm_conv_forward.1} parent=0 // pred_check
    _
  $region15: #{spectral_norm_conv_forward.1} parent=0 // pred_check_branch
    %16 = sbr.rel (0) target = $region17
  $region16: #{spectral_norm_conv_forward.1} parent=0 // pred_region
    _
  $region17: #{spectral_norm_conv_forward.1} parent=0 // pred_fallthru
    _
  %v17 = vld [vmem:[%s1] sm:$0xff]
  %v18 = vld [vmem:[%s0] sm:$0xff]
  %20 = vset.pattern.permute.xlu0 0
  %21 = vperm.xlu0 %20, %v18
  %v22 = vpop.permute.xlu0 %21
  %v24 = vmul.f32 %v17, %v22
  %vm25 = vcmask 293888
  %v26 = vsel %vm25, %v24, 0.0
  %v27 = vrot.slane %v26, 4
  %v28 = vadd.f32 %v26, %v27
  %v29 = vrot.slane %v28, 2
  %v30 = vadd.f32 %v28, %v29
  %v31 = vrot.slane %v30, 1
  %v32 = vadd.f32 %v30, %v31
  %v33 = vmul.f32 %v32, %v32
  %v34 = vsel %vm25, %v33, 0.0
  %35 = vadd.xlane.f32.xlu0 %v34
  %v36 = vpop.xlane.xlu0 %35
  %v37 = vrsqrt.pop %v36
  %v38 = vmul.f32 %v32, %v37
  %v39 = vmul.f32 %v17, %v38
  %v40 = vsel %vm25, %v39, 0.0
  %41 = vadd.xlane.f32.xlu0 %v40
  %v42 = vpop.xlane.xlu0 %41
  %v43 = vmul.f32 %v42, %v42
  %v44 = vrot.slane %v43, 4
  %v45 = vadd.f32 %v43, %v44
  %v46 = vrot.slane %v45, 2
  %v47 = vadd.f32 %v45, %v46
  %v48 = vrot.slane %v47, 1
  %v49 = vadd.f32 %v47, %v48
  %v50 = vrsqrt.pop %v49
  %v51 = vmul.f32 %v42, %v50
  %v52 = vmul.f32 %v51, %v17
  %v53 = vmul.f32 %v52, %v38
  %v54 = vsel %vm25, %v53, 0.0
  %55 = vadd.xlane.f32.xlu0 %v54
  %v56 = vpop.xlane.xlu0 %55
  %v57 = vrot.slane %v56, 4
  %v58 = vadd.f32 %v56, %v57
  %v59 = vrot.slane %v58, 2
  %v60 = vadd.f32 %v58, %v59
  %v61 = vrot.slane %v60, 1
  %v62 = vadd.f32 %v60, %v61
  %v63 = vrcp.pop %v62
  %v64 = vmul.f32 %v17, %v63
  %v65 = vld [vmem:[%s2] sm:$0xff]
  %v66 = vld [vmem:[%s3] sm:$0xff]
  %v67 = vld [vmem:[%s3 + $0x8] sm:$0xff]
  %v68 = vld [vmem:[%s3 + $0x10] sm:$0xff]
  %v69 = vld [vmem:[%s3 + $0x18] sm:$0xff]
  %v70 = vld [vmem:[%s3 + $0x20] sm:$0xff]
  %v71 = vld [vmem:[%s3 + $0x28] sm:$0xff]
  %v72 = vld [vmem:[%s3 + $0x30] sm:$0xff]
  %v73 = vld [vmem:[%s3 + $0x38] sm:$0xff]
  %v74 = vld [vmem:[%s3 + $0x40] sm:$0xf]
  %v75 = vld [vmem:[%s3 + $0x48] sm:$0xf]
  %77 = vset.pattern.permute.xlu0 0
  %78 = vperm.xlu0 %77, %v65
  %v79 = vpop.permute.xlu0 %78
  %v82 = vsel %vm25, %v64, 0
  %vm84 = vcmask 1043456
  %v86 = vsel %vm84, %v74, 0
  %v89 = vsel %vm84, %v75, 0
  %91 = vmatprep.subr.mxu0 0.0
  %92 = vmatpush1.msra.mxu0 0.0
  %93 = vmatprep.subr.mxu0 0.0
  %94 = vmatpush1.msra.mxu0 0.0
  %95 = vmatprep.subr.mxu0 0.0
  %96 = vmatpush1.msra.mxu0 0.0
  %97 = vmatprep.subr.mxu0 0.0
  %98 = vmatpush1.msra.mxu0 0.0
  %99 = vmatprep.subr.mxu0 0.0
  %100 = vmatpush1.msra.mxu0 0.0
  %101 = vmatprep.subr.mxu0 0.0
  %102 = vmatpush1.msra.mxu0 0.0
  %103 = vmatprep.subr.mxu0 0.0
  %104 = vmatpush1.msra.mxu0 0.0
  %105 = vmatprep.subr.mxu0 0.0
  %106 = vmatpush1.msra.mxu0 0.0
  %107 = vmatprep.subr.mxu0 0.0
  %108 = vmatpush1.msra.mxu0 0.0
  %109 = vmatprep.subr.mxu0 0.0
  %110 = vmatpush1.msra.mxu0 0.0
  %111 = vmatprep.subr.mxu0 0.0
  %112 = vmatpush1.msra.mxu0 0.0
  %113 = vmatprep.subr.mxu0 %v89
  %114 = vmatpush1.msra.mxu0 %v86
  %115 = vmatprep.subr.mxu0 %v73
  %116 = vmatpush1.msra.mxu0 %v72
  %117 = vmatprep.subr.mxu0 %v71
  %118 = vmatpush1.msra.mxu0 %v70
  %119 = vmatprep.subr.mxu0 %v69
  %120 = vmatpush1.msra.mxu0 %v68
  %121 = vmatprep.subr.mxu0 %v67
  %122 = vmatpush1.msra.mxu0 %v66
  %123 = vmatprep.subr.mxu0 0.0
  %124 = vmatpush2.msra.mxu0 0.0
  %125 = vmatprep.subr.mxu0 0.0
  %126 = vmatpush2.msra.mxu0 0.0
  %127 = vmatprep.subr.mxu0 0.0
  %128 = vmatpush2.msra.mxu0 0.0
  %129 = vmatprep.subr.mxu0 0.0
  %130 = vmatpush2.msra.mxu0 0.0
  %131 = vmatprep.subr.mxu0 0.0
  %132 = vmatpush2.msra.mxu0 0.0
  %133 = vmatprep.subr.mxu0 0.0
  %134 = vmatpush2.msra.mxu0 0.0
  %135 = vmatprep.subr.mxu0 0.0
  %136 = vmatpush2.msra.mxu0 0.0
  %137 = vmatprep.subr.mxu0 0.0
  %138 = vmatpush2.msra.mxu0 0.0
  %139 = vmatprep.subr.mxu0 0.0
  %140 = vmatpush2.msra.mxu0 0.0
  %141 = vmatprep.subr.mxu0 0.0
  %142 = vmatpush2.msra.mxu0 0.0
  %143 = vmatprep.subr.mxu0 0.0
  %144 = vmatpush2.msra.mxu0 0.0
  %145 = vmatprep.subr.mxu0 0.0
  %146 = vmatpush2.msra.mxu0 0.0
  %147 = vmatprep.subr.mxu0 0.0
  %148 = vmatpush2.msra.mxu0 0.0
  %149 = vmatprep.subr.mxu0 0.0
  %150 = vmatpush2.msra.mxu0 0.0
  %151 = vmatprep.subr.mxu0 0.0
  %152 = vmatpush2.msra.mxu0 0.0
  %153 = vmatprep.subr.mxu0 0.0
  %154 = vmatpush2.msra.mxu0 0.0
  %155 = vmatprep.mubr.f32.mxu0 0.0
  %156 = vmatmul.mubr.f32.gmra.mxu0 %v82
  %v157 = vpop.f32.mrf.mxu0
  %v158 = vadd.f32 %v79, %v157
  %v159 = vpop.f32.mrf.mxu0
  %v160 = vadd.f32 %v79, %v159
  %161 = vdwg.mxu0
  %162 = vst [vmem:[%s4] sm:$0xff] %v158
  %163 = vst [vmem:[%s4 + $0x8] sm:$0xff] %v160
  %s164 = scalar_lea.vmem %s3, 80
  %v165 = vld [vmem:[%s164] sm:$0xff]
  %v166 = vld [vmem:[%s164 + $0x8] sm:$0xff]
  %v167 = vld [vmem:[%s164 + $0x10] sm:$0xff]
  %v168 = vld [vmem:[%s164 + $0x18] sm:$0xff]
  %v169 = vld [vmem:[%s164 + $0x20] sm:$0xff]
  %v170 = vld [vmem:[%s164 + $0x28] sm:$0xff]
  %v171 = vld [vmem:[%s164 + $0x30] sm:$0xff]
  %v172 = vld [vmem:[%s164 + $0x38] sm:$0xff]
  %v173 = vld [vmem:[%s164 + $0x40] sm:$0xf]
  %v174 = vld [vmem:[%s164 + $0x48] sm:$0xf]
  %v176 = vsel %vm84, %v173, 0
  %v179 = vsel %vm84, %v174, 0
  %181 = vmatprep.subr.mxu0 0.0
  %182 = vmatpush1.msra.mxu0 0.0
  %183 = vmatprep.subr.mxu0 0.0
  %184 = vmatpush1.msra.mxu0 0.0
  %185 = vmatprep.subr.mxu0 0.0
  %186 = vmatpush1.msra.mxu0 0.0
  %187 = vmatprep.subr.mxu0 0.0
  %188 = vmatpush1.msra.mxu0 0.0
  %189 = vmatprep.subr.mxu0 0.0
  %190 = vmatpush1.msra.mxu0 0.0
  %191 = vmatprep.subr.mxu0 0.0
  %192 = vmatpush1.msra.mxu0 0.0
  %193 = vmatprep.subr.mxu0 0.0
  %194 = vmatpush1.msra.mxu0 0.0
  %195 = vmatprep.subr.mxu0 0.0
  %196 = vmatpush1.msra.mxu0 0.0
  %197 = vmatprep.subr.mxu0 0.0
  %198 = vmatpush1.msra.mxu0 0.0
  %199 = vmatprep.subr.mxu0 0.0
  %200 = vmatpush1.msra.mxu0 0.0
  %201 = vmatprep.subr.mxu0 0.0
  %202 = vmatpush1.msra.mxu0 0.0
  %203 = vmatprep.subr.mxu0 %v179
  %204 = vmatpush1.msra.mxu0 %v176
  %205 = vmatprep.subr.mxu0 %v172
  %206 = vmatpush1.msra.mxu0 %v171
  %207 = vmatprep.subr.mxu0 %v170
  %208 = vmatpush1.msra.mxu0 %v169
  %209 = vmatprep.subr.mxu0 %v168
  %210 = vmatpush1.msra.mxu0 %v167
  %211 = vmatprep.subr.mxu0 %v166
  %212 = vmatpush1.msra.mxu0 %v165
  %213 = vmatprep.subr.mxu0 0.0
  %214 = vmatpush2.msra.mxu0 0.0
  %215 = vmatprep.subr.mxu0 0.0
  %216 = vmatpush2.msra.mxu0 0.0
  %217 = vmatprep.subr.mxu0 0.0
  %218 = vmatpush2.msra.mxu0 0.0
  %219 = vmatprep.subr.mxu0 0.0
  %220 = vmatpush2.msra.mxu0 0.0
  %221 = vmatprep.subr.mxu0 0.0
  %222 = vmatpush2.msra.mxu0 0.0
  %223 = vmatprep.subr.mxu0 0.0
  %224 = vmatpush2.msra.mxu0 0.0
  %225 = vmatprep.subr.mxu0 0.0
  %226 = vmatpush2.msra.mxu0 0.0
  %227 = vmatprep.subr.mxu0 0.0
  %228 = vmatpush2.msra.mxu0 0.0
  %229 = vmatprep.subr.mxu0 0.0
  %230 = vmatpush2.msra.mxu0 0.0
  %231 = vmatprep.subr.mxu0 0.0
  %232 = vmatpush2.msra.mxu0 0.0
  %233 = vmatprep.subr.mxu0 0.0
  %234 = vmatpush2.msra.mxu0 0.0
  %235 = vmatprep.subr.mxu0 0.0
  %236 = vmatpush2.msra.mxu0 0.0
  %237 = vmatprep.subr.mxu0 0.0
  %238 = vmatpush2.msra.mxu0 0.0
  %239 = vmatprep.subr.mxu0 0.0
  %240 = vmatpush2.msra.mxu0 0.0
  %241 = vmatprep.subr.mxu0 0.0
  %242 = vmatpush2.msra.mxu0 0.0
  %243 = vmatprep.subr.mxu0 0.0
  %244 = vmatpush2.msra.mxu0 0.0
  %245 = vmatprep.mubr.f32.mxu0 0.0
  %246 = vmatmul.mubr.f32.gmra.mxu0 %v82
  %v247 = vpop.f32.mrf.mxu0
  %v248 = vadd.f32 %v79, %v247
  %v249 = vpop.f32.mrf.mxu0
  %v250 = vadd.f32 %v79, %v249
  %251 = vdwg.mxu0
  %s252 = scalar_lea.vmem %s4, 16
  %253 = vst [vmem:[%s252] sm:$0xff] %v248
  %254 = vst [vmem:[%s252 + $0x8] sm:$0xff] %v250
  // Predicated region
  $region18: #{spectral_norm_conv_forward.1} parent=0 // pred_check
    _
  $region19: #{spectral_norm_conv_forward.1} parent=0 // pred_check_branch
    %256 = sbr.rel (0) target = $region21
  $region20: #{spectral_norm_conv_forward.1} parent=0 // pred_region
    _
  $region21: #{spectral_norm_conv_forward.1} parent=0 // pred_fallthru
    _
  // Predicated region
  $region22: #{spectral_norm_conv_forward.1} parent=0 // pred_check
    _
  $region23: #{spectral_norm_conv_forward.1} parent=0 // pred_check_branch
    %258 = sbr.rel (0) target = $region25
  $region24: #{spectral_norm_conv_forward.1} parent=0 // pred_region
    _
  $region25: #{spectral_norm_conv_forward.1} parent=0 // pred_fallthru
    _

</llo_original>
